<compile_context>
chip_gen: v7x
topology: tpu7x:2x2x1
jax: 0.10.0
libtpu: 0.0.40
codegen_flags: <defaults>
</compile_context>

<pallas_src>
import functools
import math

import jax
import jax.numpy as jnp
from jax.experimental import pallas as pl
from jax.experimental.pallas import tpu as pltpu


_RESIDENT_PE_MAX_BYTES = 2 * 1024 * 1024   # keep the PE table VMEM-resident below this


def _add_pe_tiled_kernel(x_ref, pe_ref, o_ref):
    # x_ref / pe_ref / o_ref : (block_s, block_f) tiles; PE streamed per step.
    # Native-dtype elementwise add (no f32 upcast).
    o_ref[...] = x_ref[...] + pe_ref[...]


def _add_pe_resident_kernel(block_s, x_ref, pe_ref, o_ref):
    # pe_ref holds the whole (row-padded) PE table, DMA'd once and resident in
    # VMEM for the entire grid; slice this step's block_s rows ourselves.
    start = pl.multiple_of(pl.program_id(0) * block_s, 8)
    o_ref[...] = x_ref[...] + pe_ref[pl.ds(start, block_s), :]


def _vmem_budget():
    """Returns (per-tile byte target, vmem_limit_bytes), generation-aware."""
    default_cap = 64 * 1024 * 1024            # conservative: v7x per-core VMEM
    try:
        cap = int(getattr(pltpu.get_tpu_info(), "vmem_capacity_bytes", default_cap))
    except Exception:                          # info unavailable -> stay conservative
        cap = default_cap
    # v7x (64 MiB): 32 MiB limit / 4 MiB tiles.  v5e/v6e (128 MiB): 64 MiB / 8 MiB.
    vmem_limit = int(min(max(cap // 2, 16 * 1024 * 1024), 64 * 1024 * 1024))
    # x + out double-buffered ~= 4 tiles; streamed PE adds at most 2 more.
    return vmem_limit // 8, vmem_limit


def _pick_block_s(seq_len, row_bytes, target_bytes, min_steps=4):
    """Sequence tile: multiple of 8 sublanes, ~target_bytes per activation tile,
    and (best effort) at least `min_steps` grid steps so both v7x TensorCores
    get work under dimension_semantics=("parallel", ...)."""
    if seq_len < 8:
        return seq_len                         # single full-extent block
    s_pad = -(-seq_len // 8) * 8               # round S up to sublanes
    bs = max(8, (target_bytes // max(row_bytes, 1)) // 8 * 8)
    cap = -(-s_pad // min_steps)               # keep >= min_steps grid steps
    cap = max(8, -(-cap // 8) * 8)
    return int(min(bs, cap, s_pad))


def positional_encoding_lut(x, pos_embed_weight, *, block_s=None,
                            donate_x=False, pe_resident=None):
    """x: (S, N, D) sequence-first activations; pos_embed_weight: (max_len, D).

    Returns x + pos_embed_weight[:S][:, None, :]   (eval-mode forward).
    """
    S, N, D = x.shape
    max_len, d_model = pos_embed_weight.shape
    assert d_model == D and S <= max_len

    F = N * D
    itemsize = jnp.dtype(x.dtype).itemsize
    target_bytes, vmem_limit = _vmem_budget()

    # Lane-dense view: sequence rows on sublanes, all (batch, feature) elements
    # on lanes.  Flattened row s of x is [x[s,0,:], ..., x[s,N-1,:]], so the
    # matching PE row is pe[s] repeated N times (jnp.tile along the last axis).
    # (If N*D < 128 the tail stores are still masked, but the whole problem is
    # then tiny — a fused XLA add would win anyway; kernel kept per spec.)
    x2d = x.reshape(S, F)
    pe = pos_embed_weight
    if pe.dtype != x.dtype:
        pe = pe.astype(x.dtype)                # do the in-kernel add natively
    pe2d = jnp.tile(pe, (1, N)) if N > 1 else pe

    row_bytes = F * itemsize
    if 8 * row_bytes > target_bytes and F > 128:
        # Extremely wide rows: tile the feature axis too (multiples of 128 lanes).
        block_f = min(F, max(128, (target_bytes // (8 * itemsize)) // 128 * 128))
        auto_bs = S if S < 8 else 8
    else:
        block_f = F
        auto_bs = _pick_block_s(S, row_bytes, target_bytes)

    if block_s is None:
        block_s = auto_bs
    elif S < 8:
        block_s = S
    else:
        block_s = max(8, (int(block_s) // 8) * 8)          # keep sublane multiple
        block_s = min(block_s, -(-S // 8) * 8)

    grid_s = pl.cdiv(S, block_s)
    grid_f = pl.cdiv(F, block_f)
    grid = (grid_s, grid_f)

    # Small PE table: DMA once (constant index_map), resident across the grid.
    resident_rows = grid_s * block_s
    resident_bytes = resident_rows * F * itemsize
    use_resident = (block_f == F) and (resident_bytes <= _RESIDENT_PE_MAX_BYTES)
    if pe_resident is not None:
        use_resident = bool(pe_resident) and (block_f == F)

    if use_resident:
        # Pad/trim rows to exactly grid_s*block_s so the in-kernel pl.ds slice
        # of the last (possibly partial) sequence block never goes OOB.
        if resident_rows > max_len:
            pe2d = jnp.pad(pe2d, ((0, resident_rows - max_len), (0, 0)))
        elif resident_rows < max_len:
            pe2d = pe2d[:resident_rows]
        pe_spec = pl.BlockSpec((resident_rows, F), lambda i, j: (0, 0))
        kernel = functools.partial(_add_pe_resident_kernel, block_s)
    else:
        # Streamed per-step PE block.  If the last block window extends past
        # max_len, Pallas clamps it; those rows only feed masked output rows.
        pe_spec = pl.BlockSpec((block_s, block_f), lambda i, j: (i, j))
        kernel = _add_pe_tiled_kernel

    kwargs = {}
    if donate_x:
        # x (operand 0) aliases the output: drops one activation-sized HBM
        # allocation when the caller actually donates x (XLA inserts a
        # defensive copy otherwise).
        kwargs["input_output_aliases"] = {0: 0}

    out2d = pl.pallas_call(
        kernel,
        out_shape=jax.ShapeDtypeStruct((S, F), x.dtype),
        grid=grid,
        in_specs=[
            pl.BlockSpec((block_s, block_f), lambda i, j: (i, j)),
            pe_spec,
        ],
        out_specs=pl.BlockSpec((block_s, block_f), lambda i, j: (i, j)),
        compiler_params=pltpu.CompilerParams(
            # Both axes are embarrassingly parallel -> shards across both
            # TensorCores on v7x (near-free on single-TC v5e/v6e).
            dimension_semantics=("parallel", "parallel"),
            vmem_limit_bytes=vmem_limit,
        ),
        **kwargs,
    )(x2d, pe2d)

    # TODO(synk): dropout (p=0.1) omitted — forward implemented in eval mode; a
    # training-mode path would draw the keep-mask in-kernel with
    # pltpu.prng_seed / pltpu.prng_random_bits.
    return out2d.reshape(S, N, D)


def init_pos_embed(key, max_len, d_model, dtype=jnp.float32):
    """kaiming_normal_(mode='fan_in'): fan_in = d_model, gain = sqrt(2)."""
    std = math.sqrt(2.0 / d_model)
    w = jax.random.normal(key, (max_len, d_model), dtype=jnp.float32) * std
    return w.astype(dtype)


if __name__ == "__main__":
    MAX_LEN = 250
    key = jax.random.PRNGKey(0)
    k_w32, k_w128, k_x1, k_x2, k_x3 = jax.random.split(key, 5)

    # --- module's real shapes: seq=8, batch=2, d_model=32 (single block) ----
    D = 32
    w32 = init_pos_embed(k_w32, MAX_LEN, D)
    S, N = 8, 2
    x = jax.random.normal(k_x1, (S, N, D), dtype=jnp.float32)
    out = jax.block_until_ready(positional_encoding_lut(x, w32))
    ref = x + w32[:S][:, None, :]
    assert out.shape == (S, N, D)
    assert jnp.allclose(out, ref, atol=1e-6, rtol=1e-6), "mismatch (single block)"

    # --- gridded path incl. partial last block (S=60, block_s=16 -> grid 4) -
    S2, N2 = 60, 2
    x2 = jax.random.normal(k_x2, (S2, N2, D), dtype=jnp.float32)
    ref2 = x2 + w32[:S2][:, None, :]
    out2a = jax.block_until_ready(
        positional_encoding_lut(x2, w32, block_s=16, pe_resident=False))
    assert jnp.allclose(out2a, ref2, atol=1e-6, rtol=1e-6), "mismatch (streamed PE)"
    out2b = jax.block_until_ready(
        positional_encoding_lut(x2, w32, block_s=16, donate_x=True))
    assert jnp.allclose(out2b, ref2, atol=1e-6, rtol=1e-6), "mismatch (resident PE)"

    # --- wider model (fully lane-dense, unmasked stores): d_model=128 -------
    D3 = 128
    w128 = init_pos_embed(k_w128, MAX_LEN, D3)
    S3, N3 = 40, 2
    x3 = jax.random.normal(k_x3, (S3, N3, D3), dtype=jnp.float32)
    out3 = jax.block_until_ready(positional_encoding_lut(x3, w128))
    ref3 = x3 + w128[:S3][:, None, :]
    assert jnp.allclose(out3, ref3, atol=1e-6, rtol=1e-6), "mismatch (d_model=128)"

    print("KERNEL_OK")
</pallas_src>

<mosaic_0001>
module attributes {stable_mosaic.version = 11 : i64} {
  func.func @_add_pe_resident_kernel(%arg0: i32, %arg1: i32, %arg2: memref<8x64xf32, #tpu.memory_space<vmem>>, %arg3: memref<8x64xf32, #tpu.memory_space<vmem>>, %arg4: memref<8x64xf32, #tpu.memory_space<vmem>>) attributes {dimension_semantics = [#tpu.dimension_semantics<parallel>, #tpu.dimension_semantics<parallel>], iteration_bounds = array<i64: 1, 1>, scalar_prefetch = 0 : i64, scratch_operands = 0 : i64, tpu.core_type = #tpu.core_type<tc>, window_params = [{transform_indices = @transform_0, window_bounds = array<i64: 8, 64>}, {pipeline_mode = #tpu.pipeline_mode<synchronous>, transform_indices = @transform_1, window_bounds = array<i64: 8, 64>}, {transform_indices = @transform_2, window_bounds = array<i64: 8, 64>}]} {
    %c8_i32 = arith.constant 8 : i32
    %0 = arith.muli %arg0, %c8_i32 : i32
    %1 = tpu.assume_multiple %0, 8 : i32
    %c0 = arith.constant 0 : index
    %c0_0 = arith.constant 0 : index
    %2 = vector.load %arg2[%c0, %c0_0] : memref<8x64xf32, #tpu.memory_space<vmem>>, vector<8x64xf32>
    %3 = arith.index_cast %1 : i32 to index
    %c0_1 = arith.constant 0 : index
    %4 = vector.load %arg3[%3, %c0_1] : memref<8x64xf32, #tpu.memory_space<vmem>>, vector<8x64xf32>
    %5 = arith.addf %2, %4 : vector<8x64xf32>
    %c0_2 = arith.constant 0 : index
    %c0_3 = arith.constant 0 : index
    %6 = vector.load %arg4[%c0_2, %c0_3] : memref<8x64xf32, #tpu.memory_space<vmem>>, vector<8x64xf32>
    tpu.vector_store %arg4[%c0_2, %c0_3], %5 {strides = array<i32>} : memref<8x64xf32, #tpu.memory_space<vmem>>, vector<8x64xf32>,
    return
  }
  func.func @transform_0(%arg0: i32, %arg1: i32) -> (i32, i32) {
    %c0_i32 = arith.constant 0 : i32
    return %arg0, %arg1 : i32, i32
  }
  func.func @transform_1(%arg0: i32, %arg1: i32) -> (i32, i32) {
    %c0_i32 = arith.constant 0 : i32
    %c0_i32_0 = arith.constant 0 : i32
    %c0_i32_1 = arith.constant 0 : i32
    return %c0_i32, %c0_i32_0 : i32, i32
  }
  func.func @transform_2(%arg0: i32, %arg1: i32) -> (i32, i32) {
    %c0_i32 = arith.constant 0 : i32
    return %arg0, %arg1 : i32, i32
  }
}

</mosaic_0001>

<llo_original>
// kernel: tpu_custom_call.1
$region0: #{tpu_custom_call.1}
  #allocation0 [shape = 'u32[]', space=smem, size = 0x4, offset = 0x4, fixed_abs, tag = 'smem constant byte address 0x4 - core index']
  #allocation1 [shape = 'u32[144,128]{1,0:T(1,128)}', space=vmem, size = 0x12000, scoped, tag = 'internal scratch']
  %s0 = inlined_call_operand.hbm [shape: f32[8,64], index: 0, kind: input, shape index: {}]
  %s1 = inlined_call_operand.hbm [shape: f32[8,64], index: 1, kind: input, shape index: {}]
  %s2 = inlined_call_operand.hbm [shape: f32[8,64], index: 2, kind: output, shape index: {}]
  %s3 = sld [smem:[#allocation0]]
  $region26: #{tpu_custom_call.1} parent=0
    _
  %s5 = ssub.s32 1, %s3
  %s6 = scalar_select 0, %s5, %s3
  $region1: #{tpu_custom_call.1} parent=0
    #allocation2 [shape = 'u8[4096]{0}', space=vmem, size = 0x1000, scoped, tag = 'input window, operand 0, single buffered']
    #allocation3 [shape = 's32[1]{0}', space=sflag, size = 0x4, scoped, tag = 'scoped memory for tpu_custom_call.1']
    #allocation4 [shape = 's32[1]{0}', space=sflag, size = 0x4, scoped, tag = 'scoped memory for tpu_custom_call.1']
    #allocation5 [shape = 'u8[4096]{0}', space=vmem, size = 0x1000, scoped, tag = 'input window, operand 1, single buffered']
    #allocation6 [shape = 's32[1]{0}', space=sflag, size = 0x4, scoped, tag = 'scoped memory for tpu_custom_call.1']
    #allocation7 [shape = 'u8[4096]{0}', space=vmem, size = 0x1000, scoped, tag = 'output window, operand 0, single buffered']
    %7 = vsyncpa [#allocation3], 0
    %8 = vsyncpa [#allocation6], 0
    %9 = vsyncpa [#allocation4], 0
    // Predicated region
    $region2: #{tpu_custom_call.1} parent=1 // pred_check
      _
    $region3: #{tpu_custom_call.1} parent=1 // pred_check_branch
      %11 = sbr.rel (0) target = $region5
    $region4: #{tpu_custom_call.1} parent=1 // pred_region
      %s13 = ssub.s32 128, 128
      %14 = vsyncadd [#allocation3], %s13
      %s16 = sshll.u32 [#allocation2], 4
      %s17 = int_to_ptr.vmem [resolvable:$true] %s16
      %19 = dma.hbm_to_vmem [thread:$0]  %s0, 128, %s17, [#allocation3]
    $region5: #{tpu_custom_call.1} parent=1 // pred_fallthru
      _
    // Predicated region
    $region6: #{tpu_custom_call.1} parent=1 // pred_check
      _
    $region7: #{tpu_custom_call.1} parent=1 // pred_check_branch
      %21 = sbr.rel (0) target = $region9
    $region8: #{tpu_custom_call.1} parent=1 // pred_region
      %s23 = ssub.s32 128, 128
      %24 = vsyncadd [#allocation6], %s23
      %s26 = sshll.u32 [#allocation5], 4
      %s27 = int_to_ptr.vmem [resolvable:$true] %s26
      %29 = dma.hbm_to_vmem [thread:$0]  %s1, 128, %s27, [#allocation6]
    $region9: #{tpu_custom_call.1} parent=1 // pred_fallthru
      _
    // Predicated region
    $region10: #{tpu_custom_call.1} parent=1 // pred_check
      _
    $region11: #{tpu_custom_call.1} parent=1 // pred_check_branch
      %31 = sbr.rel (0) target = $region13
    $region12: #{tpu_custom_call.1} parent=1 // pred_region
      %32 = dma.done [#allocation3], 128
    $region13: #{tpu_custom_call.1} parent=1 // pred_fallthru
      _
    // Predicated region
    $region14: #{tpu_custom_call.1} parent=1 // pred_check
      _
    $region15: #{tpu_custom_call.1} parent=1 // pred_check_branch
      %34 = sbr.rel (0) target = $region17
    $region16: #{tpu_custom_call.1} parent=1 // pred_region
      %35 = dma.done [#allocation6], 128
    $region17: #{tpu_custom_call.1} parent=1 // pred_fallthru
      _
    %s36 = smul.u32 0, 8
    %v37 = vld [vmem:[#allocation2] sm:$0xff]
    %s38 = scalar_lea.vmem [#allocation5], %s36
    %v39 = vld [vmem:[%s38] sm:$0xff]
    %v40 = vadd.f32 %v37, %v39
    %vm41 = vcmask 523264
    %42 = vst.msk [vmem:[#allocation7] sm:$0xff] %vm41, %v40
    // Predicated region
    $region18: #{tpu_custom_call.1} parent=1 // pred_check
      _
    $region19: #{tpu_custom_call.1} parent=1 // pred_check_branch
      %44 = sbr.rel (0) target = $region21
    $region20: #{tpu_custom_call.1} parent=1 // pred_region
      %s46 = ssub.s32 128, 128
      %47 = vsyncadd [#allocation4], %s46
      %s49 = sshll.u32 [#allocation7], 4
      %s50 = int_to_ptr.vmem [resolvable:$true] %s49
      %52 = dma.vmem_to_hbm [thread:$0]  %s50, 128, %s2, [#allocation4]
    $region21: #{tpu_custom_call.1} parent=1 // pred_fallthru
      _
    // Predicated region
    $region22: #{tpu_custom_call.1} parent=1 // pred_check
      _
    $region23: #{tpu_custom_call.1} parent=1 // pred_check_branch
      %54 = sbr.rel (0) target = $region25
    $region24: #{tpu_custom_call.1} parent=1 // pred_region
      %55 = dma.done [#allocation4], 128
    $region25: #{tpu_custom_call.1} parent=1 // pred_fallthru
      _
    %56 = vsyncpa [#allocation3], 1
    %57 = vsyncpa [#allocation6], 1
    %58 = vsyncpa [#allocation4], 1

</llo_original>
